<compile_context>
chip_gen: v7x
topology: tpu7x:2x2x1
jax: 0.10.0
libtpu: 0.0.40
codegen_flags: <defaults>
</compile_context>

<pallas_src>
import jax
import jax.numpy as jnp
from jax.experimental import pallas as pl
from jax.experimental.pallas import tpu as pltpu

_LANE = 128


def _round_up(x, m):
    return ((x + m - 1) // m) * m


def _cdiv(a, b):
    return (a + b - 1) // b


def _sublane_multiple(itemsize):
    # Sub-32-bit dtypes pack along sublanes: 8 rows (f32) / 16 (bf16) / 32 (int8).
    return {4: 8, 2: 16, 1: 32}.get(itemsize, 8)


def projector_kernel(x_ref, wt_ref, b_ref, o_ref):
    # x_ref : (TILE_N, C, HW)  native NCHW layout (H*W on the lane axis)
    # wt_ref: (C, NC_PAD)      weight.T pre-scaled by 1/(H*W), zero-padded
    # b_ref : (1, NC_PAD)      f32 bias, zero-padded
    # o_ref : (TILE_N, NC_PAD)
    # Spatial sum (XLU cross-lane reduce) with f32 accumulation; the avg-pool's
    # 1/(H*W) is folded into wt, so sum -> matmul == mean-pool -> linear.
    pooled = jnp.sum(x_ref[...], axis=-1, dtype=jnp.float32)            # (TILE_N, C)
    out = jnp.dot(pooled.astype(wt_ref.dtype), wt_ref[...],
                  preferred_element_type=jnp.float32)                   # (TILE_N, NC_PAD)
    o_ref[...] = (out + b_ref[...]).astype(o_ref.dtype)


def _vmem_limit_bytes():
    """Generation-safe scoped-VMEM limit (never above what v7x's 64 MiB holds)."""
    limit = 48 * 1024 * 1024
    try:
        kind = jax.devices()[0].device_kind.lower()
        if any(tag in kind for tag in ("v4", "v5", "v6")):
            limit = 100 * 1024 * 1024     # these parts have 128 MiB VMEM per core
    except Exception:
        pass
    return limit


def _pick_tile_n(n, c, hw, nc_pad, x_itemsize, w_itemsize, out_itemsize,
                 vmem_budget_bytes):
    """Batch tile: biggest that fits VMEM, balanced into an even # of grid steps.

    Pallas double-buffers every operand by default (even ones with a constant
    index_map), so everything is counted 2x here.
    """
    sub = _sublane_multiple(x_itemsize)
    align = max(sub, _sublane_multiple(out_itemsize))

    # Per-batch-row VMEM footprint (double-buffered x block + output block).
    x_row = _round_up(c, sub) * _round_up(hw, _LANE) * x_itemsize
    o_row = nc_pad * out_itemsize
    per_row = 2 * (x_row + o_row)
    # Resident -- but still double-buffered -- weight and bias.
    w_bytes = 2 * _round_up(c, _sublane_multiple(w_itemsize)) * nc_pad * w_itemsize
    b_bytes = 2 * 8 * nc_pad * 4
    avail = vmem_budget_bytes - w_bytes - b_bytes
    tile_max = int(min(max(avail // per_row, 1), 512))

    if tile_max >= n:
        if n <= align:
            return n                       # block == full batch dim: always legal
        # Fits in one step: split into two near-equal aligned steps anyway so the
        # "parallel" batch grid shards evenly over v7x's two TensorCores (one
        # extra ~0.35us step is noise on single-core v5e/v6e).
        half = _round_up(_cdiv(n, 2), align)
        return half if half < n else n

    # Doesn't fit: smallest even number of near-equal aligned steps that fits.
    k = 1
    while True:
        t = _round_up(_cdiv(n, 2 * k), align)
        if t <= tile_max or t <= align:
            return max(min(t, n), 1)
        k += 1


def projector_forward(x_nchw, weight, bias):
    """AdaptiveAvgPool2d((1,1)) -> flatten -> Linear on an NCHW feature map.

    x_nchw: (N, C, H, W); weight: (num_classes, C); bias: (num_classes,)
    """
    N, C, H, W = x_nchw.shape
    HW = H * W
    num_classes = weight.shape[0]
    nc_pad = _round_up(num_classes, _LANE)

    # Free, metadata-only reshape (NCHW is contiguous): no transpose, no extra
    # HBM pass over the feature map.
    x = x_nchw.reshape(N, C, HW)

    # Keep f32 matmul for f32 activations (exact semantics of the torch head);
    # use the native bf16 MXU path when the backbone runs in bf16.
    mm_dtype = jnp.bfloat16 if x.dtype == jnp.bfloat16 else jnp.float32

    # Fold 1/(H*W) into the transposed weight (in f32); pad classes to a lane
    # multiple so output stores are unmasked lane-dense `vst`s.
    wt = (weight.astype(jnp.float32) / float(HW)).T.astype(mm_dtype)     # (C, nc)
    wt = jnp.pad(wt, ((0, 0), (0, nc_pad - num_classes)))                # (C, nc_pad)
    b = jnp.pad(bias.astype(jnp.float32),
                (0, nc_pad - num_classes)).reshape(1, nc_pad)            # (1, nc_pad)

    vmem_limit = _vmem_limit_bytes()
    tile_n = _pick_tile_n(
        N, C, HW, nc_pad,
        x.dtype.itemsize, wt.dtype.itemsize, x_nchw.dtype.itemsize,
        vmem_budget_bytes=vmem_limit - (4 << 20))      # slack for Mosaic scratch

    grid = (_cdiv(N, tile_n),)

    cost = pl.CostEstimate(
        flops=2 * N * C * nc_pad + N * C * HW,
        transcendentals=0,
        bytes_accessed=(x.size * x.dtype.itemsize
                        + wt.size * wt.dtype.itemsize
                        + b.size * b.dtype.itemsize
                        + N * nc_pad * x_nchw.dtype.itemsize),
    )

    out = pl.pallas_call(
        projector_kernel,
        out_shape=jax.ShapeDtypeStruct((N, nc_pad), x_nchw.dtype),
        grid=grid,
        in_specs=[
            pl.BlockSpec((tile_n, C, HW), lambda n: (n, 0, 0)),
            pl.BlockSpec((C, nc_pad), lambda n: (0, 0)),
            pl.BlockSpec((1, nc_pad), lambda n: (0, 0)),
        ],
        out_specs=pl.BlockSpec((tile_n, nc_pad), lambda n: (n, 0)),
        compiler_params=pltpu.CompilerParams(
            dimension_semantics=("parallel",),    # megacore-shardable batch axis
            vmem_limit_bytes=vmem_limit,
        ),
        cost_estimate=cost,
    )(x, wt, b)

    return out[:, :num_classes]


if __name__ == "__main__":
    # Small deterministic shapes consistent with the module (the real ResNet-50
    # projector would be C=2048, H=W=7, num_classes e.g. 1000).
    N, C, H, W = 2, 32, 8, 8
    num_classes = 10

    key = jax.random.PRNGKey(0)
    kx, kw, kb = jax.random.split(key, 3)
    x = jax.random.normal(kx, (N, C, H, W), dtype=jnp.float32)
    weight = jax.random.normal(kw, (num_classes, C), dtype=jnp.float32) * 0.02
    bias = jax.random.normal(kb, (num_classes,), dtype=jnp.float32) * 0.01

    out = jax.block_until_ready(projector_forward(x, weight, bias))

    # Pure-JAX reference (avgpool -> flatten -> linear)
    ref = jnp.mean(x, axis=(2, 3)) @ weight.T + bias
    assert out.shape == (N, num_classes)
    assert jnp.allclose(out, ref, atol=1e-4, rtol=1e-4), "mismatch vs reference"

    print("KERNEL_OK")
</pallas_src>

<mosaic_0001>
module attributes {stable_mosaic.version = 11 : i64} {
  func.func @projector_kernel(%arg0: i32, %arg1: memref<2x32x64xf32, #tpu.memory_space<vmem>>, %arg2: memref<32x128xf32, #tpu.memory_space<vmem>>, %arg3: memref<1x128xf32, #tpu.memory_space<vmem>>, %arg4: memref<2x128xf32, #tpu.memory_space<vmem>>) attributes {dimension_semantics = [#tpu.dimension_semantics<parallel>], iteration_bounds = array<i64: 1>, scalar_prefetch = 0 : i64, scratch_operands = 0 : i64, tpu.core_type = #tpu.core_type<tc>, window_params = [{transform_indices = @transform_0, window_bounds = array<i64: 2, 32, 64>}, {pipeline_mode = #tpu.pipeline_mode<synchronous>, transform_indices = @transform_1, window_bounds = array<i64: 32, 128>}, {pipeline_mode = #tpu.pipeline_mode<synchronous>, transform_indices = @transform_2, window_bounds = array<i64: 1, 128>}, {transform_indices = @transform_3, window_bounds = array<i64: 2, 128>}]} {
    %c0 = arith.constant 0 : index
    %c0_0 = arith.constant 0 : index
    %c0_1 = arith.constant 0 : index
    %0 = vector.load %arg1[%c0, %c0_0, %c0_1] : memref<2x32x64xf32, #tpu.memory_space<vmem>>, vector<2x32x64xf32>
    %cst = arith.constant dense<0.000000e+00> : vector<2x32xf32>
    %1 = vector.multi_reduction <add>, %0, %cst [2] : vector<2x32x64xf32> to vector<2x32xf32>
    %c0_2 = arith.constant 0 : index
    %c0_3 = arith.constant 0 : index
    %2 = vector.load %arg2[%c0_2, %c0_3] : memref<32x128xf32, #tpu.memory_space<vmem>>, vector<32x128xf32>
    %cst_4 = arith.constant dense<0.000000e+00> : vector<2x128xf32>
    %3 = tpu.matmul %1, %2, %cst_4 {dimension_numbers = #tpu.dot_dimension_numbers<[1], [0], [0], [1], [0, 0, 1, 1], [], []>} : vector<2x32xf32>, vector<32x128xf32>, vector<2x128xf32> -> vector<2x128xf32>
    %c0_5 = arith.constant 0 : index
    %c0_6 = arith.constant 0 : index
    %4 = vector.load %arg3[%c0_5, %c0_6] : memref<1x128xf32, #tpu.memory_space<vmem>>, vector<1x128xf32>
    %5 = vector.broadcast %4 : vector<1x128xf32> to vector<2x128xf32>
    %6 = arith.addf %3, %5 : vector<2x128xf32>
    %c0_7 = arith.constant 0 : index
    %c0_8 = arith.constant 0 : index
    %7 = vector.load %arg4[%c0_7, %c0_8] : memref<2x128xf32, #tpu.memory_space<vmem>>, vector<2x128xf32>
    tpu.vector_store %arg4[%c0_7, %c0_8], %6 {strides = array<i32>} : memref<2x128xf32, #tpu.memory_space<vmem>>, vector<2x128xf32>,
    return
  }
  func.func @transform_0(%arg0: i32) -> (i32, i32, i32) {
    %c0_i32 = arith.constant 0 : i32
    %c0_i32_0 = arith.constant 0 : i32
    %c0_i32_1 = arith.constant 0 : i32
    return %arg0, %c0_i32, %c0_i32_0 : i32, i32, i32
  }
  func.func @transform_1(%arg0: i32) -> (i32, i32) {
    %c0_i32 = arith.constant 0 : i32
    %c0_i32_0 = arith.constant 0 : i32
    %c0_i32_1 = arith.constant 0 : i32
    return %c0_i32, %c0_i32_0 : i32, i32
  }
  func.func @transform_2(%arg0: i32) -> (i32, i32) {
    %c0_i32 = arith.constant 0 : i32
    %c0_i32_0 = arith.constant 0 : i32
    %c0_i32_1 = arith.constant 0 : i32
    return %c0_i32, %c0_i32_0 : i32, i32
  }
  func.func @transform_3(%arg0: i32) -> (i32, i32) {
    %c0_i32 = arith.constant 0 : i32
    %c0_i32_0 = arith.constant 0 : i32
    return %arg0, %c0_i32 : i32, i32
  }
}

</mosaic_0001>

<llo_original>
// kernel: tpu_custom_call.1
$region0: #{tpu_custom_call.1}
  #allocation0 [shape = 'u32[]', space=smem, size = 0x4, offset = 0x4, fixed_abs, tag = 'smem constant byte address 0x4 - core index']
  #allocation1 [shape = 'u32[144,128]{1,0:T(1,128)}', space=vmem, size = 0x12000, scoped, tag = 'internal scratch']
  %s0 = inlined_call_operand.hbm [shape: f32[2,32,64], index: 0, kind: input, shape index: {}]
  %s1 = inlined_call_operand.hbm [shape: f32[32,128], index: 1, kind: input, shape index: {}]
  %s2 = inlined_call_operand.vmem [shape: f32[1,128], index: 2, kind: input, shape index: {}]
  %s3 = inlined_call_operand.hbm [shape: f32[2,128], index: 3, kind: output, shape index: {}]
  %s4 = sld [smem:[#allocation0]]
  $region30: #{tpu_custom_call.1} parent=0
    _
  %s6 = ssub.s32 1, %s4
  %s7 = scalar_select 0, %s6, %s4
  $region1: #{tpu_custom_call.1} parent=0
    #allocation2 [shape = 'u8[32768]{0}', space=vmem, size = 0x8000, scoped, tag = 'input window, operand 0, single buffered']
    #allocation3 [shape = 's32[1]{0}', space=sflag, size = 0x4, scoped, tag = 'scoped memory for tpu_custom_call.1']
    #allocation4 [shape = 's32[1]{0}', space=sflag, size = 0x4, scoped, tag = 'scoped memory for tpu_custom_call.1']
    #allocation5 [shape = 'u8[16384]{0}', space=vmem, size = 0x4000, scoped, tag = 'input window, operand 1, single buffered']
    #allocation6 [shape = 's32[1]{0}', space=sflag, size = 0x4, scoped, tag = 'scoped memory for tpu_custom_call.1']
    #allocation7 [shape = 'u8[1024]{0}', space=vmem, size = 0x400, scoped, tag = 'output window, operand 0, single buffered']
    %8 = vsyncpa [#allocation3], 0
    %9 = vsyncpa [#allocation6], 0
    %10 = vsyncpa [#allocation4], 0
    // Predicated region
    $region2: #{tpu_custom_call.1} parent=1 // pred_check
      _
    $region3: #{tpu_custom_call.1} parent=1 // pred_check_branch
      %12 = sbr.rel (0) target = $region5
    $region4: #{tpu_custom_call.1} parent=1 // pred_region
      %s14 = ssub.s32 1024, 1024
      %15 = vsyncadd [#allocation3], %s14
      %s16 = sshll.u32 [#allocation2], 4
      %s17 = int_to_ptr.vmem [resolvable:$true] %s16
      %22 = dma.hbm_to_vmem [thread:$0]  %s0, 1024, %s17, [#allocation3], 128, 128, 8
    $region5: #{tpu_custom_call.1} parent=1 // pred_fallthru
      _
    // Predicated region
    $region6: #{tpu_custom_call.1} parent=1 // pred_check
      _
    $region7: #{tpu_custom_call.1} parent=1 // pred_check_branch
      %24 = sbr.rel (0) target = $region9
    $region8: #{tpu_custom_call.1} parent=1 // pred_region
      %s26 = ssub.s32 512, 512
      %27 = vsyncadd [#allocation6], %s26
      %s28 = sshll.u32 [#allocation5], 4
      %s29 = int_to_ptr.vmem [resolvable:$true] %s28
      %34 = dma.hbm_to_vmem [thread:$0]  %s1, 512, %s29, [#allocation6], 128, 128, 8
    $region9: #{tpu_custom_call.1} parent=1 // pred_fallthru
      _
    // Predicated region
    $region10: #{tpu_custom_call.1} parent=1 // pred_check
      _
    $region11: #{tpu_custom_call.1} parent=1 // pred_check_branch
      %36 = sbr.rel (0) target = $region13
    $region12: #{tpu_custom_call.1} parent=1 // pred_region
      _
    $region13: #{tpu_custom_call.1} parent=1 // pred_fallthru
      _
    // Predicated region
    $region14: #{tpu_custom_call.1} parent=1 // pred_check
      _
    $region15: #{tpu_custom_call.1} parent=1 // pred_check_branch
      %38 = sbr.rel (0) target = $region17
    $region16: #{tpu_custom_call.1} parent=1 // pred_region
      %39 = dma.done [#allocation3], 1024
    $region17: #{tpu_custom_call.1} parent=1 // pred_fallthru
      _
    // Predicated region
    $region18: #{tpu_custom_call.1} parent=1 // pred_check
      _
    $region19: #{tpu_custom_call.1} parent=1 // pred_check_branch
      %41 = sbr.rel (0) target = $region21
    $region20: #{tpu_custom_call.1} parent=1 // pred_region
      %42 = dma.done [#allocation6], 512
    $region21: #{tpu_custom_call.1} parent=1 // pred_fallthru
      _
    %v43 = vld [vmem:[#allocation2] sm:$0xff]
    %v44 = vld [vmem:[#allocation2 + $0x8] sm:$0xff]
    %v45 = vld [vmem:[#allocation2 + $0x10] sm:$0xff]
    %v46 = vld [vmem:[#allocation2 + $0x18] sm:$0xff]
    %v47 = vld [vmem:[#allocation2 + $0x20] sm:$0xff]
    %v48 = vld [vmem:[#allocation2 + $0x28] sm:$0xff]
    %v49 = vld [vmem:[#allocation2 + $0x30] sm:$0xff]
    %v50 = vld [vmem:[#allocation2 + $0x38] sm:$0xff]
    %vm51 = vcmask 523264
    %v52 = vsel %vm51, %v43, 0.0
    %53 = vadd.xlane.f32.xlu0 %v52
    %v54 = vpop.xlane.xlu0 %53
    %v55 = vsel %vm51, %v44, 0.0
    %56 = vadd.xlane.f32.xlu0 %v55
    %v57 = vpop.xlane.xlu0 %56
    %v58 = vsel %vm51, %v45, 0.0
    %59 = vadd.xlane.f32.xlu0 %v58
    %v60 = vpop.xlane.xlu0 %59
    %v61 = vsel %vm51, %v46, 0.0
    %62 = vadd.xlane.f32.xlu0 %v61
    %v63 = vpop.xlane.xlu0 %62
    %v64 = vsel %vm51, %v47, 0.0
    %65 = vadd.xlane.f32.xlu0 %v64
    %v66 = vpop.xlane.xlu0 %65
    %v67 = vsel %vm51, %v48, 0.0
    %68 = vadd.xlane.f32.xlu0 %v67
    %v69 = vpop.xlane.xlu0 %68
    %v70 = vsel %vm51, %v49, 0.0
    %71 = vadd.xlane.f32.xlu0 %v70
    %v72 = vpop.xlane.xlu0 %71
    %v73 = vsel %vm51, %v50, 0.0
    %74 = vadd.xlane.f32.xlu0 %v73
    %v75 = vpop.xlane.xlu0 %74
    %v76 = vld [vmem:[#allocation5] sm:$0xff]
    %v77 = vld [vmem:[#allocation5 + $0x8] sm:$0xff]
    %v78 = vld [vmem:[#allocation5 + $0x10] sm:$0xff]
    %v79 = vld [vmem:[#allocation5 + $0x18] sm:$0xff]
    %v80 = vld [vmem:[%s2] sm:$0x1]
    %v82 = vlaneseq
    %v83 = vshrl.u32 %v82, 7
    %v84 = vsub.s32 0, %v83
    %v85 = vrot.slane %v80, %v84
    %v95 = vlaneseq
    %v96 = vand.u32 %v95, 127
    %v97 = vlaneseq
    %v98 = vshrl.u32 %v97, 7
    %v99 = vsub.s32 %v96, %v98
    %v100 = vrot.slane %v54, %v99
    %v101 = vadd.s32 %v96, 4294967288
    %v102 = vlaneseq
    %v103 = vshrl.u32 %v102, 7
    %v104 = vsub.s32 %v101, %v103
    %v105 = vrot.slane %v57, %v104
    %vm106 = vcmask 130112
    %v107 = vsel %vm106, %v105, %v100
    %v108 = vadd.s32 %v96, 4294967280
    %v109 = vlaneseq
    %v110 = vshrl.u32 %v109, 7
    %v111 = vsub.s32 %v108, %v110
    %v112 = vrot.slane %v60, %v111
    %vm113 = vcmask 195712
    %v114 = vsel %vm113, %v112, %v107
    %v115 = vadd.s32 %v96, 4294967272
    %v116 = vlaneseq
    %v117 = vshrl.u32 %v116, 7
    %v118 = vsub.s32 %v115, %v117
    %v119 = vrot.slane %v63, %v118
    %vm120 = vcmask 261312
    %v121 = vsel %vm120, %v119, %v114
    %v122 = vlaneseq
    %v123 = vshrl.u32 %v122, 7
    %v124 = vsub.s32 %v96, %v123
    %v125 = vrot.slane %v66, %v124
    %v126 = vlaneseq
    %v127 = vshrl.u32 %v126, 7
    %v128 = vsub.s32 %v101, %v127
    %v129 = vrot.slane %v69, %v128
    %v130 = vsel %vm106, %v129, %v125
    %v131 = vlaneseq
    %v132 = vshrl.u32 %v131, 7
    %v133 = vsub.s32 %v108, %v132
    %v134 = vrot.slane %v72, %v133
    %v135 = vsel %vm113, %v134, %v130
    %v136 = vlaneseq
    %v137 = vshrl.u32 %v136, 7
    %v138 = vsub.s32 %v115, %v137
    %v139 = vrot.slane %v75, %v138
    %v140 = vsel %vm120, %v139, %v135
    %vm141 = vcmask 1041409
    %v142 = vsel %vm141, %v140, %v121
    %vm143 = vcmask 261120
    %v144 = vsel %vm143, %v142, 0
    %146 = vmatprep.subr.mxu0 0.0
    %147 = vmatpush1.msra.mxu0 %v76
    %148 = vmatprep.subr.mxu0 0.0
    %149 = vmatpush1.msra.mxu0 %v77
    %150 = vmatprep.subr.mxu0 0.0
    %151 = vmatpush1.msra.mxu0 %v78
    %152 = vmatprep.subr.mxu0 0.0
    %153 = vmatpush1.msra.mxu0 %v79
    %154 = vmatprep.subr.mxu0 0.0
    %155 = vmatpush1.msra.mxu0 0.0
    %156 = vmatprep.subr.mxu0 0.0
    %157 = vmatpush1.msra.mxu0 0.0
    %158 = vmatprep.subr.mxu0 0.0
    %159 = vmatpush1.msra.mxu0 0.0
    %160 = vmatprep.subr.mxu0 0.0
    %161 = vmatpush1.msra.mxu0 0.0
    %162 = vmatprep.subr.mxu0 0.0
    %163 = vmatpush1.msra.mxu0 0.0
    %164 = vmatprep.subr.mxu0 0.0
    %165 = vmatpush1.msra.mxu0 0.0
    %166 = vmatprep.subr.mxu0 0.0
    %167 = vmatpush1.msra.mxu0 0.0
    %168 = vmatprep.subr.mxu0 0.0
    %169 = vmatpush1.msra.mxu0 0.0
    %170 = vmatprep.subr.mxu0 0.0
    %171 = vmatpush1.msra.mxu0 0.0
    %172 = vmatprep.subr.mxu0 0.0
    %173 = vmatpush1.msra.mxu0 0.0
    %174 = vmatprep.subr.mxu0 0.0
    %175 = vmatpush1.msra.mxu0 0.0
    %176 = vmatprep.subr.mxu0 0.0
    %177 = vmatpush1.msra.mxu0 0.0
    %178 = vmatprep.subr.mxu0 0.0
    %179 = vmatpush1.msra.mxu0 0.0
    %180 = vmatprep.subr.mxu0 0.0
    %181 = vmatpush1.msra.mxu0 0.0
    %182 = vmatprep.subr.mxu0 0.0
    %183 = vmatpush1.msra.mxu0 0.0
    %184 = vmatprep.subr.mxu0 0.0
    %185 = vmatpush1.msra.mxu0 0.0
    %186 = vmatprep.subr.mxu0 0.0
    %187 = vmatpush1.msra.mxu0 0.0
    %188 = vmatprep.subr.mxu0 0.0
    %189 = vmatpush1.msra.mxu0 0.0
    %190 = vmatprep.subr.mxu0 0.0
    %191 = vmatpush1.msra.mxu0 0.0
    %192 = vmatprep.subr.mxu0 0.0
    %193 = vmatpush1.msra.mxu0 0.0
    %194 = vmatprep.subr.mxu0 0.0
    %195 = vmatpush1.msra.mxu0 0.0
    %196 = vmatprep.subr.mxu0 0.0
    %197 = vmatpush1.msra.mxu0 0.0
    %198 = vmatprep.subr.mxu0 0.0
    %199 = vmatpush1.msra.mxu0 0.0
    %200 = vmatprep.subr.mxu0 0.0
    %201 = vmatpush1.msra.mxu0 0.0
    %202 = vmatprep.subr.mxu0 0.0
    %203 = vmatpush1.msra.mxu0 0.0
    %204 = vmatprep.subr.mxu0 0.0
    %205 = vmatpush1.msra.mxu0 0.0
    %206 = vmatprep.subr.mxu0 0.0
    %207 = vmatpush1.msra.mxu0 0.0
    %208 = vmatprep.subr.mxu0 0.0
    %209 = vmatpush1.msra.mxu0 0.0
    %210 = vmatprep.mubr.f32.mxu0 0.0
    %211 = vmatmul.mubr.f32.gmra.mrb[0].mxu0 %v144
    %v212 = vpop.f32.mrb[0].mxu0
    %v213 = vadd.f32 %v85, %v212
    %v214 = vpop.f32.mrb[0].mxu0
    %215 = vdwg.mxu0
    %216 = vst [vmem:[#allocation7] sm:$0x3] %v213
    // Predicated region
    $region22: #{tpu_custom_call.1} parent=1 // pred_check
      _
    $region23: #{tpu_custom_call.1} parent=1 // pred_check_branch
      %218 = sbr.rel (0) target = $region25
    $region24: #{tpu_custom_call.1} parent=1 // pred_region
      %s220 = ssub.s32 32, 32
      %221 = vsyncadd [#allocation4], %s220
      %s223 = sshll.u32 [#allocation7], 4
      %s224 = int_to_ptr.vmem [resolvable:$true] %s223
      %226 = dma.vmem_to_hbm [thread:$0]  %s224, 32, %s3, [#allocation4]
    $region25: #{tpu_custom_call.1} parent=1 // pred_fallthru
      _
    // Predicated region
    $region26: #{tpu_custom_call.1} parent=1 // pred_check
      _
    $region27: #{tpu_custom_call.1} parent=1 // pred_check_branch
      %228 = sbr.rel (0) target = $region29
    $region28: #{tpu_custom_call.1} parent=1 // pred_region
      %229 = dma.done [#allocation4], 32
    $region29: #{tpu_custom_call.1} parent=1 // pred_fallthru
      _
    %230 = vsyncpa [#allocation3], 1
    %231 = vsyncpa [#allocation6], 1
    %232 = vsyncpa [#allocation4], 1

</llo_original>
